<compile_context>
chip_gen: v5e
topology: v5e:2x2
jax: 0.10.0
libtpu: 0.0.40
codegen_flags: <defaults>
</compile_context>

<pallas_src>
import functools

import jax
import jax.numpy as jnp
from jax.experimental import pallas as pl
from jax.experimental.pallas import tpu as pltpu


def _attention_edge_decoder_kernel(h_ref, wq_ref, wkvc_ref, hmap_ref, hmap_t_ref,
                                   edge_ref, out_ref, yv_ref,
                                   *, n_heads, head_dim, n, aux_node):
    """Grid = (batch blocks, edge-column tiles).

    The attention part runs once per batch block (column tile 0) and caches the
    per-node scores yv in VMEM scratch; every column tile then performs one
    lane-dense (bb, n) @ (n, col_tile) matmul into the output slab."""
    D = n_heads * head_dim

    @pl.when(pl.program_id(1) == 0)
    def _attention():
        hb = h_ref[...]                                   # (bb, n_total, D)
        bb = hb.shape[0]
        if aux_node:
            h = hb[:, :n, :]                              # (bb, n, D)  real nodes
            h_g = hb[:, n:, :].reshape(bb, D)             # (bb, D)     aux / virtual node
        else:
            h = hb
            h_g = jnp.mean(hb, axis=1)                    # (bb, D)

        hf = h.reshape(bb * n, D)

        # Projections.  wkvc = [W_k^T | W_v^T | W_c], so ONE (bb*n, D) @ (D, 3D)
        # matmul yields k, v and the W_c-folded node features hc.
        q = jnp.dot(h_g, wq_ref[...], preferred_element_type=jnp.float32)        # (bb, D)
        proj = jnp.dot(hf, wkvc_ref[...], preferred_element_type=jnp.float32)    # (bb*n, 3D)
        k = proj[:, :D].reshape(bb, n, D)
        v = proj[:, D:2 * D].reshape(bb, n, D)
        hc = proj[:, 2 * D:].reshape(bb, n, D)

        # Head-batched scores; 1/sqrt(head_dim) is folded into hmap in the wrapper.
        qk = k * q[:, None, :]                                                   # (bb, n, D)
        s = jnp.dot(qk.reshape(bb * n, D), hmap_ref[...],
                    preferred_element_type=jnp.float32).reshape(bb, n, n_heads)

        # Numerically-stable softmax over nodes; one exact reciprocal per (item, head).
        s = s - jnp.max(s, axis=1, keepdims=True)
        p = jnp.exp(s)
        p = p * (1.0 / jnp.sum(p, axis=1, keepdims=True))                        # (bb, n, H)

        # Broadcast per-head probs back over head_dim lanes, contract with v over nodes.
        p_full = jnp.dot(p.reshape(bb * n, n_heads), hmap_t_ref[...],
                         preferred_element_type=jnp.float32).reshape(bb, n, D)
        y = jnp.sum(p_full * v, axis=1)                                          # (bb, D)

        # yv[b, j] = (y[b] @ W_c^T) . h[b, j]  ==  y[b] . (h[b, j] @ W_c) = y . hc
        yv_ref[...] = jnp.sum(hc * y[:, None, :], axis=-1)                       # (bb, n)

    # Fused pairwise-edge + (2 -> E) linear epilogue: lane-dense output slab.
    out_ref[...] = jnp.dot(yv_ref[...], edge_ref[...],
                           preferred_element_type=jnp.float32).astype(out_ref.dtype)


def _select_tiling(bp, n_total, n, D, H, out_w_pad, batch_block, col_block,
                   vmem_budget_bytes=24 << 20):
    """VMEM-aware tile selection.

    The (bb, col_tile) output slab and the (n, col_tile) edge tile are the VMEM
    hogs; the 24 MiB budget fits v7x's 32 MiB default scoped VMEM with headroom
    and is well inside v5e/v6e once vmem_limit_bytes is raised."""
    fb = 4                      # f32 bytes
    lane = 128
    n_tot_pad = -(-n_total // 8) * 8
    d_pad = max(D, lane)

    # Column tile of the fused edge epilogue: multiple of 128 dividing out_w_pad.
    if col_block is None:
        m = out_w_pad // lane
        cands = sorted((lane * d for d in range(1, m + 1) if m % d == 0), reverse=True)
        col_block = next((c for c in cands if 2 * n * c * fb <= vmem_budget_bytes // 4),
                         cands[-1])
    assert out_w_pad % col_block == 0 and col_block % lane == 0

    const_bytes = (4 * D * d_pad + 2 * H * d_pad) * fb        # single-buffered weights/maps

    def footprint(bb):
        h_in = 2 * bb * n_tot_pad * d_pad * fb                # double-buffered input block
        out = 2 * bb * col_block * fb                         # double-buffered output slab
        edge = 2 * n * col_block * fb                         # double-buffered edge tile
        tmp = 8 * bb * n * d_pad * fb                         # lane-padded in-kernel temporaries
        scr = bb * lane * fb                                  # yv scratch
        return const_bytes + h_in + out + edge + tmp + scr

    if batch_block is None:
        cands = [d for d in range(8, bp + 1, 8) if bp % d == 0]
        if bp >= 16 and any(d <= bp // 2 for d in cands):
            cands = [d for d in cands if d <= bp // 2]        # keep >= 2 parallel grid steps
        cands = sorted(cands, reverse=True)
        if not cands:
            batch_block = bp                                  # no x8 divisor: full batch only
        else:
            batch_block = next((d for d in cands if footprint(d) <= vmem_budget_bytes),
                               cands[-1])
    assert bp % batch_block == 0, "batch block must divide the batch size"
    assert batch_block % 8 == 0 or batch_block == bp, (
        "batch block must be a multiple of 8 (or the full batch) for sublane layout")
    return batch_block, col_block


def prepare_attention_edge_decoder(params, *, n_nodes, n_heads):
    """One-time constant plumbing (hoisted out of the per-call wrapper)."""
    f32 = jnp.float32
    D = params["W_q"].shape[0]
    E = params["W_l"].shape[0]
    head_dim = D // n_heads

    wq_t = params["W_q"].T.astype(f32)                                     # (D, D)
    # Merged projection weight: [W_k^T | W_v^T | W_c]  (W_c NOT transposed: yv = y . (h @ W_c)).
    wkvc = jnp.concatenate([params["W_kv"][:D, :].T,
                            params["W_kv"][D:, :].T,
                            params["W_c"]], axis=1).astype(f32)            # (D, 3D)

    # head_map[d, hh] = scale iff embedding dim d belongs to head hh (scale folded in).
    scale = 1.0 / (head_dim ** 0.5)
    head_ids = jnp.arange(D) // head_dim
    indicator = (head_ids[:, None] == jnp.arange(n_heads)[None, :]).astype(f32)   # (D, H)
    head_map = indicator * jnp.float32(scale)
    head_map_t = indicator.T                                               # (H, D)

    # edge_mat folds the pairwise-feature build AND the (2 -> E) linear:
    #   edge_mat[r, i*n*E + j*E + e] = W_l[e, 0]*(r == j) + W_l[e, 1]*(r == i)
    # Columns are zero-padded up to a multiple of 128 for unmasked full-lane stores.
    n = n_nodes
    out_w = n * n * E
    out_w_pad = -(-out_w // 128) * 128
    wl = params["W_l"].astype(f32)
    eye_n = jnp.eye(n, dtype=f32)
    m_row = eye_n[:, None, :, None] * wl[None, None, None, :, 0]           # (n, 1, n, E)
    m_col = eye_n[:, :, None, None] * wl[None, None, None, :, 1]           # (n, n, 1, E)
    edge_mat = (jnp.broadcast_to(m_row, (n, n, n, E)) +
                jnp.broadcast_to(m_col, (n, n, n, E))).reshape(n, out_w)
    if out_w_pad != out_w:
        edge_mat = jnp.pad(edge_mat, ((0, 0), (0, out_w_pad - out_w)))

    return {"wq_t": wq_t, "wkvc": wkvc, "head_map": head_map,
            "head_map_t": head_map_t, "edge_mat": edge_mat,
            "edge_out_dim": E}


def attention_edge_decoder(h, consts, *, n_heads, aux_node,
                           batch_block=None, col_block=None):
    """(bp, n_total, D) -> (bp, n*n, edge_out_dim), matching the PyTorch forward."""
    bp, n_total, D = h.shape
    edge_mat = consts["edge_mat"]
    n = edge_mat.shape[0]
    E = consts["edge_out_dim"]
    out_w = n * n * E
    out_w_pad = edge_mat.shape[1]
    head_dim = D // n_heads
    assert n_total == (n + 1 if aux_node else n)

    bb, cb = _select_tiling(bp, n_total, n, D, n_heads, out_w_pad,
                            batch_block, col_block)

    kernel = functools.partial(
        _attention_edge_decoder_kernel,
        n_heads=n_heads, head_dim=head_dim, n=n, aux_node=aux_node)

    const_map = lambda b, j: (0, 0)
    single = pl.Buffered(1)       # grid-invariant operands: fetched once, single-buffered

    out = pl.pallas_call(
        kernel,
        out_shape=jax.ShapeDtypeStruct((bp, out_w_pad), jnp.float32),
        grid=(bp // bb, out_w_pad // cb),
        in_specs=[
            pl.BlockSpec((bb, n_total, D), lambda b, j: (b, 0, 0)),           # h batch block
            pl.BlockSpec((D, D), const_map, pipeline_mode=single),            # W_q^T
            pl.BlockSpec((D, 3 * D), const_map, pipeline_mode=single),        # [W_k^T|W_v^T|W_c]
            pl.BlockSpec((D, n_heads), const_map, pipeline_mode=single),      # head map (scaled)
            pl.BlockSpec((n_heads, D), const_map, pipeline_mode=single),      # head map^T
            pl.BlockSpec((n, cb), lambda b, j: (0, j)),                       # edge-matrix tile
        ],
        out_specs=pl.BlockSpec((bb, cb), lambda b, j: (b, j)),                # lane-dense slab
        scratch_shapes=[pltpu.VMEM((bb, n), jnp.float32)],                    # cached yv
        compiler_params=pltpu.CompilerParams(
            dimension_semantics=("parallel", "arbitrary"),
            # > v5e's 16 MiB scoped default; <= ~56 MiB recommended cap on v7x's 64 MiB.
            vmem_limit_bytes=48 << 20),
    )(h.astype(jnp.float32), consts["wq_t"], consts["wkvc"],
      consts["head_map"], consts["head_map_t"], edge_mat)

    if out_w_pad != out_w:
        out = out[:, :out_w]                  # drop the lane padding
    return out.reshape(bp, n * n, E)          # row-major identical layout: free reshape


def reference(h, params, *, n_heads, aux_node):
    """Pure-JAX reference mirroring the PyTorch forward pass."""
    if aux_node:
        h_main, h_g = h[:, :-1, :], h[:, -1:, :]
    else:
        h_main, h_g = h, jnp.mean(h, axis=1, keepdims=True)
    bp, n, D = h_main.shape
    hd = D // n_heads
    q = h_g @ params["W_q"].T
    kv = h_main @ params["W_kv"].T
    k, v = kv[..., :D], kv[..., D:]
    q = q.reshape(bp, 1, n_heads, hd).transpose(0, 2, 1, 3)
    k = k.reshape(bp, n, n_heads, hd).transpose(0, 2, 1, 3)
    v = v.reshape(bp, n, n_heads, hd).transpose(0, 2, 1, 3)
    s = jnp.einsum("bhqd,bhkd->bhqk", q, k) / jnp.sqrt(jnp.float32(hd))
    p = jax.nn.softmax(s, axis=-1)
    y = jnp.einsum("bhqk,bhkd->bhqd", p, v)
    y = y.transpose(0, 2, 1, 3).reshape(bp, 1, D)
    mh = y @ params["W_c"].T
    yv = jnp.einsum("bod,bnd->bon", mh, h_main)[:, 0, :]        # (bp, n)
    row = jnp.broadcast_to(yv[:, None, :], (bp, n, n))
    col = jnp.broadcast_to(yv[:, :, None], (bp, n, n))
    e = jnp.stack([row, col], axis=-1).reshape(bp, n * n, 2)
    return e @ params["W_l"].T


def init_params(key, D, edge_out_dim):
    """Deterministic Linear weights: uniform(-1/sqrt(fan_in), 1/sqrt(fan_in))."""
    k1, k2, k3, k4 = jax.random.split(key, 4)

    def lin(k, out_f, in_f):
        bound = 1.0 / (in_f ** 0.5)
        return jax.random.uniform(k, (out_f, in_f), jnp.float32, -bound, bound)

    return {
        "W_q": lin(k1, D, D),
        "W_kv": lin(k2, 2 * D, D),
        "W_c": lin(k3, D, D),
        "W_l": lin(k4, edge_out_dim, 2),
    }


if __name__ == "__main__":
    # Module config: hidden_dim=32 => internal D = 16, n_heads=4 => head_dim=4.
    hidden_dim_ctor = 32
    n_heads = 4
    edge_out_dim = 4
    aux_node = True
    D = hidden_dim_ctor // 2

    batch = 16
    n_nodes = 8
    n_total = n_nodes + 1 if aux_node else n_nodes   # last node is the aux/virtual node

    key = jax.random.PRNGKey(0)
    kh, kp = jax.random.split(key)
    h = jax.random.normal(kh, (batch, n_total, D), jnp.float32)
    params = init_params(kp, D, edge_out_dim)

    # Constants (transposed/merged weights, head maps, fused edge matrix) built once.
    consts = prepare_attention_edge_decoder(params, n_nodes=n_nodes, n_heads=n_heads)

    # batch_block=8, col_block=128 -> grid=(2, 2): exercises both the pipelined
    # "parallel" batch axis (>= 2 steps for megacore) and the column-tiled fused
    # edge epilogue with the yv VMEM-scratch reuse path.
    fwd = jax.jit(functools.partial(
        attention_edge_decoder, consts=consts, n_heads=n_heads, aux_node=aux_node,
        batch_block=8, col_block=128))
    out = jax.block_until_ready(fwd(h))

    ref = reference(h, params, n_heads=n_heads, aux_node=aux_node)
    assert out.shape == (batch, n_nodes * n_nodes, edge_out_dim), out.shape
    max_err = float(jnp.max(jnp.abs(out - ref)))
    # Tolerance has slight headroom over 3e-5 for the f32 reorderings introduced by
    # the W_c / scale folds (still far below any meaningful numerical drift).
    assert jnp.allclose(out, ref, atol=5e-5, rtol=5e-5), max_err

    print("KERNEL_OK")
</pallas_src>

<mosaic_0001>
module attributes {stable_mosaic.version = 11 : i64} {
  func.func @_attention_edge_decoder_kernel(%arg0: i32, %arg1: i32, %arg2: memref<8x9x16xf32, #tpu.memory_space<vmem>>, %arg3: memref<16x16xf32, #tpu.memory_space<vmem>>, %arg4: memref<16x48xf32, #tpu.memory_space<vmem>>, %arg5: memref<16x4xf32, #tpu.memory_space<vmem>>, %arg6: memref<4x16xf32, #tpu.memory_space<vmem>>, %arg7: memref<8x128xf32, #tpu.memory_space<vmem>>, %arg8: memref<8x128xf32, #tpu.memory_space<vmem>>, %arg9: memref<8x8xf32, #tpu.memory_space<vmem>>) attributes {dimension_semantics = [#tpu.dimension_semantics<parallel>, #tpu.dimension_semantics<arbitrary>], iteration_bounds = array<i64: 2, 2>, scalar_prefetch = 0 : i64, scratch_operands = 1 : i64, tpu.core_type = #tpu.core_type<tc>, window_params = [{transform_indices = @transform_0, window_bounds = array<i64: 8, 9, 16>}, {pipeline_mode = #tpu.pipeline_mode<synchronous>, transform_indices = @transform_1, window_bounds = array<i64: 16, 16>}, {pipeline_mode = #tpu.pipeline_mode<synchronous>, transform_indices = @transform_2, window_bounds = array<i64: 16, 48>}, {pipeline_mode = #tpu.pipeline_mode<synchronous>, transform_indices = @transform_3, window_bounds = array<i64: 16, 4>}, {pipeline_mode = #tpu.pipeline_mode<synchronous>, transform_indices = @transform_4, window_bounds = array<i64: 4, 16>}, {transform_indices = @transform_5, window_bounds = array<i64: 8, 128>}, {transform_indices = @transform_6, window_bounds = array<i64: 8, 128>}]} {
    %c0_i32 = arith.constant 0 : i32
    %0 = arith.cmpi eq, %arg1, %c0_i32 : i32
    %1 = arith.extui %0 : i1 to i32
    %c0_i32_0 = arith.constant 0 : i32
    %2 = arith.cmpi ne, %1, %c0_i32_0 : i32
    scf.if %2 {
      %c0_6 = arith.constant 0 : index
      %c0_7 = arith.constant 0 : index
      %c0_8 = arith.constant 0 : index
      %7 = vector.load %arg2[%c0_6, %c0_7, %c0_8] : memref<8x9x16xf32, #tpu.memory_space<vmem>>, vector<8x9x16xf32>
      %8 = vector.extract_strided_slice %7 {offsets = [0, 0, 0], sizes = [8, 8, 16], strides = [1, 1, 1]} : vector<8x9x16xf32> to vector<8x8x16xf32>
      %9 = vector.extract_strided_slice %7 {offsets = [0, 8, 0], sizes = [8, 1, 16], strides = [1, 1, 1]} : vector<8x9x16xf32> to vector<8x1x16xf32>
      %10 = vector.shape_cast %9 : vector<8x1x16xf32> to vector<8x16xf32>
      %11 = vector.shape_cast %8 : vector<8x8x16xf32> to vector<64x16xf32>
      %c0_9 = arith.constant 0 : index
      %c0_10 = arith.constant 0 : index
      %12 = vector.load %arg3[%c0_9, %c0_10] : memref<16x16xf32, #tpu.memory_space<vmem>>, vector<16x16xf32>
      %cst_11 = arith.constant dense<0.000000e+00> : vector<8x16xf32>
      %13 = tpu.matmul %10, %12, %cst_11 {dimension_numbers = #tpu.dot_dimension_numbers<[1], [0], [0], [1], [0, 0, 1, 1], [], []>} : vector<8x16xf32>, vector<16x16xf32>, vector<8x16xf32> -> vector<8x16xf32>
      %c0_12 = arith.constant 0 : index
      %c0_13 = arith.constant 0 : index
      %14 = vector.load %arg4[%c0_12, %c0_13] : memref<16x48xf32, #tpu.memory_space<vmem>>, vector<16x48xf32>
      %cst_14 = arith.constant dense<0.000000e+00> : vector<64x48xf32>
      %15 = tpu.matmul %11, %14, %cst_14 {dimension_numbers = #tpu.dot_dimension_numbers<[1], [0], [0], [1], [0, 0, 1, 1], [], []>} : vector<64x16xf32>, vector<16x48xf32>, vector<64x48xf32> -> vector<64x48xf32>
      %16 = vector.extract_strided_slice %15 {offsets = [0, 0], sizes = [64, 16], strides = [1, 1]} : vector<64x48xf32> to vector<64x16xf32>
      %17 = vector.shape_cast %16 : vector<64x16xf32> to vector<8x8x16xf32>
      %18 = vector.extract_strided_slice %15 {offsets = [0, 16], sizes = [64, 16], strides = [1, 1]} : vector<64x48xf32> to vector<64x16xf32>
      %19 = vector.shape_cast %18 : vector<64x16xf32> to vector<8x8x16xf32>
      %20 = vector.extract_strided_slice %15 {offsets = [0, 32], sizes = [64, 16], strides = [1, 1]} : vector<64x48xf32> to vector<64x16xf32>
      %21 = vector.shape_cast %20 : vector<64x16xf32> to vector<8x8x16xf32>
      %22 = vector.shape_cast %13 : vector<8x16xf32> to vector<8x1x16xf32>
      %23 = vector.broadcast %22 : vector<8x1x16xf32> to vector<8x8x16xf32>
      %24 = arith.mulf %17, %23 : vector<8x8x16xf32>
      %25 = vector.shape_cast %24 : vector<8x8x16xf32> to vector<64x16xf32>
      %c0_15 = arith.constant 0 : index
      %c0_16 = arith.constant 0 : index
      %26 = vector.load %arg5[%c0_15, %c0_16] : memref<16x4xf32, #tpu.memory_space<vmem>>, vector<16x4xf32>
      %cst_17 = arith.constant dense<0.000000e+00> : vector<64x4xf32>
      %27 = tpu.matmul %25, %26, %cst_17 {dimension_numbers = #tpu.dot_dimension_numbers<[1], [0], [0], [1], [0, 0, 1, 1], [], []>} : vector<64x16xf32>, vector<16x4xf32>, vector<64x4xf32> -> vector<64x4xf32>
      %28 = vector.shape_cast %27 : vector<64x4xf32> to vector<8x8x4xf32>
      %cst_18 = arith.constant dense<0xFF800000> : vector<8x4xf32>
      %29 = vector.multi_reduction <maximumf>, %28, %cst_18 [1] : vector<8x8x4xf32> to vector<8x4xf32>
      %30 = vector.shape_cast %29 : vector<8x4xf32> to vector<8x1x4xf32>
      %31 = vector.broadcast %30 : vector<8x1x4xf32> to vector<8x8x4xf32>
      %32 = arith.subf %28, %31 : vector<8x8x4xf32>
      %33 = math.exp %32 : vector<8x8x4xf32>
      %cst_19 = arith.constant dense<0.000000e+00> : vector<8x4xf32>
      %34 = vector.multi_reduction <add>, %33, %cst_19 [1] : vector<8x8x4xf32> to vector<8x4xf32>
      %35 = vector.shape_cast %34 : vector<8x4xf32> to vector<8x1x4xf32>
      %cst_20 = arith.constant 1.000000e+00 : f32
      %36 = vector.broadcast %cst_20 : f32 to vector<8x1x4xf32>
      %37 = arith.divf %36, %35 : vector<8x1x4xf32>
      %38 = vector.broadcast %37 : vector<8x1x4xf32> to vector<8x8x4xf32>
      %39 = arith.mulf %33, %38 : vector<8x8x4xf32>
      %40 = vector.shape_cast %39 : vector<8x8x4xf32> to vector<64x4xf32>
      %c0_21 = arith.constant 0 : index
      %c0_22 = arith.constant 0 : index
      %41 = vector.load %arg6[%c0_21, %c0_22] : memref<4x16xf32, #tpu.memory_space<vmem>>, vector<4x16xf32>
      %cst_23 = arith.constant dense<0.000000e+00> : vector<64x16xf32>
      %42 = tpu.matmul %40, %41, %cst_23 {dimension_numbers = #tpu.dot_dimension_numbers<[1], [0], [0], [1], [0, 0, 1, 1], [], []>} : vector<64x4xf32>, vector<4x16xf32>, vector<64x16xf32> -> vector<64x16xf32>
      %43 = vector.shape_cast %42 : vector<64x16xf32> to vector<8x8x16xf32>
      %44 = arith.mulf %43, %19 : vector<8x8x16xf32>
      %cst_24 = arith.constant dense<0.000000e+00> : vector<8x16xf32>
      %45 = vector.multi_reduction <add>, %44, %cst_24 [1] : vector<8x8x16xf32> to vector<8x16xf32>
      %46 = vector.shape_cast %45 : vector<8x16xf32> to vector<8x1x16xf32>
      %47 = vector.broadcast %46 : vector<8x1x16xf32> to vector<8x8x16xf32>
      %48 = arith.mulf %21, %47 : vector<8x8x16xf32>
      %cst_25 = arith.constant dense<0.000000e+00> : vector<8x8xf32>
      %49 = vector.multi_reduction <add>, %48, %cst_25 [2] : vector<8x8x16xf32> to vector<8x8xf32>
      %c0_26 = arith.constant 0 : index
      %c0_27 = arith.constant 0 : index
      %50 = vector.load %arg9[%c0_26, %c0_27] : memref<8x8xf32, #tpu.memory_space<vmem>>, vector<8x8xf32>
      tpu.vector_store %arg9[%c0_26, %c0_27], %49 {strides = array<i32>} : memref<8x8xf32, #tpu.memory_space<vmem>>, vector<8x8xf32>,
    } else {
    }
    %c0 = arith.constant 0 : index
    %c0_1 = arith.constant 0 : index
    %3 = vector.load %arg9[%c0, %c0_1] : memref<8x8xf32, #tpu.memory_space<vmem>>, vector<8x8xf32>
    %c0_2 = arith.constant 0 : index
    %c0_3 = arith.constant 0 : index
    %4 = vector.load %arg7[%c0_2, %c0_3] : memref<8x128xf32, #tpu.memory_space<vmem>>, vector<8x128xf32>
    %cst = arith.constant dense<0.000000e+00> : vector<8x128xf32>
    %5 = tpu.matmul %3, %4, %cst {dimension_numbers = #tpu.dot_dimension_numbers<[1], [0], [0], [1], [0, 0, 1, 1], [], []>} : vector<8x8xf32>, vector<8x128xf32>, vector<8x128xf32> -> vector<8x128xf32>
    %c0_4 = arith.constant 0 : index
    %c0_5 = arith.constant 0 : index
    %6 = vector.load %arg8[%c0_4, %c0_5] : memref<8x128xf32, #tpu.memory_space<vmem>>, vector<8x128xf32>
    tpu.vector_store %arg8[%c0_4, %c0_5], %5 {strides = array<i32>} : memref<8x128xf32, #tpu.memory_space<vmem>>, vector<8x128xf32>,
    return
  }
  func.func @transform_0(%arg0: i32, %arg1: i32) -> (i32, i32, i32) {
    %c0_i32 = arith.constant 0 : i32
    %c0_i32_0 = arith.constant 0 : i32
    %c0_i32_1 = arith.constant 0 : i32
    return %arg0, %c0_i32, %c0_i32_0 : i32, i32, i32
  }
  func.func @transform_1(%arg0: i32, %arg1: i32) -> (i32, i32) {
    %c0_i32 = arith.constant 0 : i32
    %c0_i32_0 = arith.constant 0 : i32
    %c0_i32_1 = arith.constant 0 : i32
    return %c0_i32, %c0_i32_0 : i32, i32
  }
  func.func @transform_2(%arg0: i32, %arg1: i32) -> (i32, i32) {
    %c0_i32 = arith.constant 0 : i32
    %c0_i32_0 = arith.constant 0 : i32
    %c0_i32_1 = arith.constant 0 : i32
    return %c0_i32, %c0_i32_0 : i32, i32
  }
  func.func @transform_3(%arg0: i32, %arg1: i32) -> (i32, i32) {
    %c0_i32 = arith.constant 0 : i32
    %c0_i32_0 = arith.constant 0 : i32
    %c0_i32_1 = arith.constant 0 : i32
    return %c0_i32, %c0_i32_0 : i32, i32
  }
  func.func @transform_4(%arg0: i32, %arg1: i32) -> (i32, i32) {
    %c0_i32 = arith.constant 0 : i32
    %c0_i32_0 = arith.constant 0 : i32
    %c0_i32_1 = arith.constant 0 : i32
    return %c0_i32, %c0_i32_0 : i32, i32
  }
  func.func @transform_5(%arg0: i32, %arg1: i32) -> (i32, i32) {
    %c0_i32 = arith.constant 0 : i32
    %c0_i32_0 = arith.constant 0 : i32
    return %c0_i32, %arg1 : i32, i32
  }
  func.func @transform_6(%arg0: i32, %arg1: i32) -> (i32, i32) {
    %c0_i32 = arith.constant 0 : i32
    return %arg0, %arg1 : i32, i32
  }
}

</mosaic_0001>

<llo_original>
// kernel: attention_edge_decoder.1
$region0: #{attention_edge_decoder.1}
  #allocation0 [shape = 'u32[]', space=smem, size = 0x4, offset = 0x4, fixed_abs, tag = 'smem constant byte address 0x4 - core index']
  #allocation1 [shape = 'u32[72,128]{1,0:T(1,128)}', space=vmem, size = 0x9000, scoped, tag = 'internal scratch']
  #allocation2 [shape = 'f32[8,8]{1,0:T(8,128)}', space=vmem, size = 0x1000, scoped, tag = 'scratch operand']
  %s0 = inlined_call_operand.vmem [shape: f32[16,9,16], index: 0, kind: input, shape index: {}]
  %s1 = inlined_call_operand.vmem [shape: f32[16,16], index: 1, kind: input, shape index: {}]
  %s2 = inlined_call_operand.vmem [shape: f32[16,48], index: 2, kind: input, shape index: {}]
  %s3 = inlined_call_operand.vmem [shape: f32[16,4], index: 3, kind: input, shape index: {}]
  %s4 = inlined_call_operand.vmem [shape: f32[4,16], index: 4, kind: input, shape index: {}]
  %s5 = inlined_call_operand.vmem [shape: f32[8,256], index: 5, kind: input, shape index: {}]
  %s6 = inlined_call_operand.vmem [shape: f32[16,256], index: 6, kind: output, shape index: {}]
  %s7 = sld [smem:[#allocation0]]
  $region61: #{attention_edge_decoder.1} parent=0
    _
  %s9 = ssub.s32 1, %s7
  %s10 = scalar_select 0, %s9, %s7
  loop: start=0, step=1, limit=6
  $region2: #{attention_edge_decoder.1} parent=0 // loop_pre_header
    _
  $region3: #{attention_edge_decoder.1} parent=0 // loop_header
    %s12 = sphi 0, %s16
    %p13 = scmp.ge.s32.totalorder %s12, 6
    %s19 = sphi 0, %s31
    %s20 = sphi 0, %s27
    %s21 = sphi 0, %s19
    %s22 = sphi 0, %s20
    %s23 = sphi 0, %s21
    %s24 = sphi 0, %s22
    %s34 = sphi 0, %s36
    %s37 = sphi 0, %s34
    %s38 = sphi 0, %s37
    %s54 = sphi 0, %s38
    %s58 = sphi 0, %s58
    %s60 = sphi 0, %s58
    %s61 = sphi 0, %s60
    %s75 = sphi 0, %s61
    %s79 = sphi 0, %s79
    %s81 = sphi 0, %s79
    %s82 = sphi 0, %s81
    %s96 = sphi 0, %s82
    %s100 = sphi 0, %s100
    %s102 = sphi 0, %s100
    %s103 = sphi 0, %s102
    %s117 = sphi 0, %s103
    %s121 = sphi 0, %s121
    %s123 = sphi 0, %s121
    %s124 = sphi 0, %s123
    %s138 = sphi 0, %s124
    %s144 = sphi 0, %s146
    %s147 = sphi 0, %s144
    %s148 = sphi 0, %s147
    %s164 = sphi 0, %s148
    %s172 = sphi 0, %s174
    %s175 = sphi 0, %s172
    %s176 = sphi 0, %s175
    %s192 = sphi 0, %s176
  $region4: #{attention_edge_decoder.1} parent=0 // loop_header_branch
    %15 = sbr.rel (%p13) target = $region8
  $region5: #{attention_edge_decoder.1} parent=0 // loop_body
    %s17 = ssub.s32 %s12, 1
    %s18 = ssub.s32 %s12, 2
    %s25 = sadd.s32 1, %s20
    %p26 = scmp.ge.s32.totalorder %s25, 2
    %s27 = scalar_select %p26, 0, %s25
    %s28 = sadd.s32 1, %s19
    %s29 = scalar_select %p26, %s28, %s19
    %p30 = scmp.ge.s32.totalorder %s29, 2
    %s31 = scalar_select %p30, 0, %s29
    %s32 = ssub.s32 %s19, %s31
    %p33 = scmp.eq.s32.totalorder %s32, 0
    %s35 = sadd.s32 %s34, 1
    %s36 = scalar_select %p33, %s34, %s35
    %p39 = pneg %p33
    %p40 = scmp.eq.s32.totalorder %s12, 3
    %p41 = por %p39, %p40
    %p42 = scmp.ne.s32.totalorder %s34, %s37
    %p43 = scmp.eq.s32.totalorder %s12, 0
    %p44 = por %p42, %p43
    %p45 = scmp.ne.s32.totalorder %s34, %s37
    %p46 = scmp.eq.s32.totalorder %s17, 3
    %p47 = por %p45, %p46
    %p48 = scmp.ne.s32.totalorder %s37, %s38
    %p49 = scmp.eq.s32.totalorder %s17, 0
    %p50 = por %p48, %p49
    %p51 = scmp.ne.s32.totalorder %s37, %s38
    %p52 = scmp.eq.s32.totalorder %s18, 3
    %p53 = por %p51, %p52
    %p55 = scmp.ne.s32.totalorder %s38, %s54
    %p56 = scmp.eq.s32.totalorder %s18, 0
    %p57 = por %p55, %p56
    %s59 = sadd.s32 %s58, 1
    %p62 = scmp.eq.s32.totalorder %s12, 3
    %p63 = scmp.ne.s32.totalorder %s58, %s60
    %p64 = scmp.eq.s32.totalorder %s12, 0
    %p65 = por %p63, %p64
    %p66 = scmp.ne.s32.totalorder %s58, %s60
    %p67 = scmp.eq.s32.totalorder %s17, 3
    %p68 = por %p66, %p67
    %p69 = scmp.ne.s32.totalorder %s60, %s61
    %p70 = scmp.eq.s32.totalorder %s17, 0
    %p71 = por %p69, %p70
    %p72 = scmp.ne.s32.totalorder %s60, %s61
    %p73 = scmp.eq.s32.totalorder %s18, 3
    %p74 = por %p72, %p73
    %p76 = scmp.ne.s32.totalorder %s61, %s75
    %p77 = scmp.eq.s32.totalorder %s18, 0
    %p78 = por %p76, %p77
    %s80 = sadd.s32 %s79, 1
    %p83 = scmp.eq.s32.totalorder %s12, 3
    %p84 = scmp.ne.s32.totalorder %s79, %s81
    %p85 = scmp.eq.s32.totalorder %s12, 0
    %p86 = por %p84, %p85
    %p87 = scmp.ne.s32.totalorder %s79, %s81
    %p88 = scmp.eq.s32.totalorder %s17, 3
    %p89 = por %p87, %p88
    %p90 = scmp.ne.s32.totalorder %s81, %s82
    %p91 = scmp.eq.s32.totalorder %s17, 0
    %p92 = por %p90, %p91
    %p93 = scmp.ne.s32.totalorder %s81, %s82
    %p94 = scmp.eq.s32.totalorder %s18, 3
    %p95 = por %p93, %p94
    %p97 = scmp.ne.s32.totalorder %s82, %s96
    %p98 = scmp.eq.s32.totalorder %s18, 0
    %p99 = por %p97, %p98
    %s101 = sadd.s32 %s100, 1
    %p104 = scmp.eq.s32.totalorder %s12, 3
    %p105 = scmp.ne.s32.totalorder %s100, %s102
    %p106 = scmp.eq.s32.totalorder %s12, 0
    %p107 = por %p105, %p106
    %p108 = scmp.ne.s32.totalorder %s100, %s102
    %p109 = scmp.eq.s32.totalorder %s17, 3
    %p110 = por %p108, %p109
    %p111 = scmp.ne.s32.totalorder %s102, %s103
    %p112 = scmp.eq.s32.totalorder %s17, 0
    %p113 = por %p111, %p112
    %p114 = scmp.ne.s32.totalorder %s102, %s103
    %p115 = scmp.eq.s32.totalorder %s18, 3
    %p116 = por %p114, %p115
    %p118 = scmp.ne.s32.totalorder %s103, %s117
    %p119 = scmp.eq.s32.totalorder %s18, 0
    %p120 = por %p118, %p119
    %s122 = sadd.s32 %s121, 1
    %p125 = scmp.eq.s32.totalorder %s12, 3
    %p126 = scmp.ne.s32.totalorder %s121, %s123
    %p127 = scmp.eq.s32.totalorder %s12, 0
    %p128 = por %p126, %p127
    %p129 = scmp.ne.s32.totalorder %s121, %s123
    %p130 = scmp.eq.s32.totalorder %s17, 3
    %p131 = por %p129, %p130
    %p132 = scmp.ne.s32.totalorder %s123, %s124
    %p133 = scmp.eq.s32.totalorder %s17, 0
    %p134 = por %p132, %p133
    %p135 = scmp.ne.s32.totalorder %s123, %s124
    %p136 = scmp.eq.s32.totalorder %s18, 3
    %p137 = por %p135, %p136
    %p139 = scmp.ne.s32.totalorder %s124, %s138
    %p140 = scmp.eq.s32.totalorder %s18, 0
    %p141 = por %p139, %p140
    %s142 = ssub.s32 %s20, %s27
    %p143 = scmp.eq.s32.totalorder %s142, 0
    %s145 = sadd.s32 %s144, 1
    %s146 = scalar_select %p143, %s144, %s145
    %p149 = pneg %p143
    %p150 = scmp.eq.s32.totalorder %s12, 3
    %p151 = por %p149, %p150
    %p152 = scmp.ne.s32.totalorder %s144, %s147
    %p153 = scmp.eq.s32.totalorder %s12, 0
    %p154 = por %p152, %p153
    %p155 = scmp.ne.s32.totalorder %s144, %s147
    %p156 = scmp.eq.s32.totalorder %s17, 3
    %p157 = por %p155, %p156
    %p158 = scmp.ne.s32.totalorder %s147, %s148
    %p159 = scmp.eq.s32.totalorder %s17, 0
    %p160 = por %p158, %p159
    %p161 = scmp.ne.s32.totalorder %s147, %s148
    %p162 = scmp.eq.s32.totalorder %s18, 3
    %p163 = por %p161, %p162
    %p165 = scmp.ne.s32.totalorder %s148, %s164
    %p166 = scmp.eq.s32.totalorder %s18, 0
    %p167 = por %p165, %p166
    %s168 = ssub.s32 %s19, %s31
    %s169 = ssub.s32 %s20, %s27
    %s170 = sor.u32 %s168, %s169
    %p171 = scmp.eq.s32.totalorder %s170, 0
    %s173 = sadd.s32 %s172, 1
    %s174 = scalar_select %p171, %s172, %s173
    %p177 = pneg %p171
    %p178 = scmp.eq.s32.totalorder %s12, 3
    %p179 = por %p177, %p178
    %p180 = scmp.ne.s32.totalorder %s172, %s175
    %p181 = scmp.eq.s32.totalorder %s12, 0
    %p182 = por %p180, %p181
    %p183 = scmp.ne.s32.totalorder %s172, %s175
    %p184 = scmp.eq.s32.totalorder %s17, 3
    %p185 = por %p183, %p184
    %p186 = scmp.ne.s32.totalorder %s175, %s176
    %p187 = scmp.eq.s32.totalorder %s17, 0
    %p188 = por %p186, %p187
    %p189 = scmp.ne.s32.totalorder %s175, %s176
    %p190 = scmp.eq.s32.totalorder %s18, 3
    %p191 = por %p189, %p190
    %p193 = scmp.ne.s32.totalorder %s176, %s192
    %p194 = scmp.eq.s32.totalorder %s18, 0
    %p195 = por %p193, %p194
    %p196 = scmp.le.s32.totalorder 1, %s12
    %p197 = scmp.lt.s32.totalorder %s12, 5
    %p198 = pnand %p196, %p197
    %p199 = pneg %p198
    // Predicated region
    $region9: #{attention_edge_decoder.1} parent=5 // pred_check
      _
    $region10: #{attention_edge_decoder.1} parent=5 // pred_check_branch
      %201 = sbr.rel (%p198) target = $region12
    $region11: #{attention_edge_decoder.1} parent=5 // pred_region
      %s202 = ssub.s32 %s12, 1
      // Predicated region
      $region13: #{attention_edge_decoder.1} parent=11 // pred_check
        %p203 = pneg %p71
      $region14: #{attention_edge_decoder.1} parent=11 // pred_check_branch
        %205 = sbr.rel (%p203) target = $region16
      $region15: #{attention_edge_decoder.1} parent=11 // pred_region
        _
      $region16: #{attention_edge_decoder.1} parent=11 // pred_fallthru
        _
      // Predicated region
      $region17: #{attention_edge_decoder.1} parent=11 // pred_check
        %p206 = pneg %p92
      $region18: #{attention_edge_decoder.1} parent=11 // pred_check_branch
        %208 = sbr.rel (%p206) target = $region20
      $region19: #{attention_edge_decoder.1} parent=11 // pred_region
        _
      $region20: #{attention_edge_decoder.1} parent=11 // pred_fallthru
        _
      // Predicated region
      $region21: #{attention_edge_decoder.1} parent=11 // pred_check
        %p209 = pneg %p113
      $region22: #{attention_edge_decoder.1} parent=11 // pred_check_branch
        %211 = sbr.rel (%p209) target = $region24
      $region23: #{attention_edge_decoder.1} parent=11 // pred_region
        _
      $region24: #{attention_edge_decoder.1} parent=11 // pred_fallthru
        _
      // Predicated region
      $region25: #{attention_edge_decoder.1} parent=11 // pred_check
        %p212 = pneg %p134
      $region26: #{attention_edge_decoder.1} parent=11 // pred_check_branch
        %214 = sbr.rel (%p212) target = $region28
      $region27: #{attention_edge_decoder.1} parent=11 // pred_region
        _
      $region28: #{attention_edge_decoder.1} parent=11 // pred_fallthru
        _
    $region12: #{attention_edge_decoder.1} parent=5 // pred_fallthru
      _
    %p215 = scmp.lt.s32.totalorder %s12, 4
    // Predicated region
    $region29: #{attention_edge_decoder.1} parent=5 // pred_check
      %p216 = pneg %p215
    $region30: #{attention_edge_decoder.1} parent=5 // pred_check_branch
      %218 = sbr.rel (%p216) target = $region32
    $region31: #{attention_edge_decoder.1} parent=5 // pred_region
      // Predicated region
      $region33: #{attention_edge_decoder.1} parent=31 // pred_check
        %p219 = pneg %p44
      $region34: #{attention_edge_decoder.1} parent=31 // pred_check_branch
        %221 = sbr.rel (%p219) target = $region36
      $region35: #{attention_edge_decoder.1} parent=31 // pred_region
        %s222 = smul.u32 8, %s19
        %p223 = scmp.lt.s32.totalorder %s222, 15
        %s224 = scalar_select %p223, %s222, 15
        %s225 = smul.addr %s224, 2
        %s226 = smul.addr %s225, 8
        %s227 = scalar_lea.vmem %s0, %s226
        %s228 = smul.u32 8, %s19
      $region36: #{attention_edge_decoder.1} parent=31 // pred_fallthru
        _
      // Predicated region
      $region37: #{attention_edge_decoder.1} parent=31 // pred_check
        %p229 = pneg %p154
      $region38: #{attention_edge_decoder.1} parent=31 // pred_check_branch
        %231 = sbr.rel (%p229) target = $region40
      $region39: #{attention_edge_decoder.1} parent=31 // pred_region
        %p232 = scmp.lt.s32.totalorder %s20, 1
        %s233 = scalar_select %p232, %s20, 1
        %s234 = smul.addr %s233, 8
        %s235 = scalar_lea.vmem %s5, %s234
      $region40: #{attention_edge_decoder.1} parent=31 // pred_fallthru
        _
    $region32: #{attention_edge_decoder.1} parent=5 // pred_fallthru
      _
    %p236 = scmp.le.s32.totalorder 1, %s12
    %p237 = scmp.lt.s32.totalorder %s12, 5
    %p238 = pnand %p236, %p237
    %p239 = pneg %p238
    // Predicated region
    $region41: #{attention_edge_decoder.1} parent=5 // pred_check
      _
    $region42: #{attention_edge_decoder.1} parent=5 // pred_check_branch
      %241 = sbr.rel (%p238) target = $region44
    $region43: #{attention_edge_decoder.1} parent=5 // pred_region
      %s242 = ssub.s32 %s12, 1
      %s243 = smul.u32 8, %s21
      %p244 = scmp.lt.s32.totalorder %s243, 15
      %s245 = scalar_select %p244, %s243, 15
      %s246 = smul.addr %s245, 2
      %s247 = smul.addr %s246, 8
      %s248 = scalar_lea.vmem %s0, %s247
      %p249 = pneg %p50
      %p250 = pneg %p47
      %p251 = pneg %p71
      %p252 = pneg %p68
      %p253 = pneg %p92
      %p254 = pneg %p89
      %p255 = pneg %p113
      %p256 = pneg %p110
      %p257 = pneg %p134
      %p258 = pneg %p131
      %p259 = scmp.lt.s32.totalorder %s22, 1
      %s260 = scalar_select %p259, %s22, 1
      %s261 = smul.addr %s260, 8
      %s262 = scalar_lea.vmem %s5, %s261
      %p263 = pneg %p160
      %p264 = pneg %p157
      %p265 = pneg %p188
      %p266 = pneg %p185
      %p267 = scmp.lt.s32.totalorder %s21, 1
      %s268 = scalar_select %p267, %s21, 1
      %p269 = scmp.lt.s32.totalorder %s22, 1
      %s270 = scalar_select %p269, %s22, 1
      %s271 = smul.addr %s268, 2
      %s272 = sadd.s32 %s270, %s271
      %s273 = smul.addr %s272, 8
      %s274 = scalar_lea.vmem %s6, %s273
      %s275 = smul.u32 8, %s21
      %p276 = scmp.lt.s32.totalorder %s275, 15
      %s277 = scalar_select %p276, %s275, 15
      %s278 = smul.addr %s277, 2
      %s279 = smul.addr %s278, 8
      %s280 = scalar_lea.vmem %s0, %s279
      %s281 = smul.u32 8, %s21
      %p282 = scmp.lt.s32.totalorder %s22, 1
      %s283 = scalar_select %p282, %s22, 1
      %s284 = smul.addr %s283, 8
      %s285 = scalar_lea.vmem %s5, %s284
      %p286 = scmp.lt.s32.totalorder %s21, 1
      %s287 = scalar_select %p286, %s21, 1
      %p288 = scmp.lt.s32.totalorder %s22, 1
      %s289 = scalar_select %p288, %s22, 1
      %s290 = smul.addr %s287, 2
      %s291 = sadd.s32 %s289, %s290
      %s292 = smul.addr %s291, 8
      %s293 = scalar_lea.vmem %s6, %s292
      %p294 = scmp.eq.s32.totalorder %s22, 0
      // Predicated region
      $region45: #{attention_edge_decoder.1} parent=43 // pred_check
        %p295 = pneg %p294
      $region46: #{attention_edge_decoder.1} parent=43 // pred_check_branch
        %297 = sbr.rel (%p295) target = $region48
      $region47: #{attention_edge_decoder.1} parent=43 // pred_region
        %v298 = vld [vmem:[%s280] sm:$0xff]
        %v299 = vld [vmem:[%s280 + $0x8] sm:$0x1]
        %v300 = vld [vmem:[%s280 + $0x10] sm:$0xff]
        %v301 = vld [vmem:[%s280 + $0x18] sm:$0x1]
        %v302 = vld [vmem:[%s280 + $0x20] sm:$0xff]
        %v303 = vld [vmem:[%s280 + $0x28] sm:$0x1]
        %v304 = vld [vmem:[%s280 + $0x30] sm:$0xff]
        %v305 = vld [vmem:[%s280 + $0x38] sm:$0x1]
        %v306 = vld [vmem:[%s280 + $0x40] sm:$0xff]
        %v307 = vld [vmem:[%s280 + $0x48] sm:$0x1]
        %v308 = vld [vmem:[%s280 + $0x50] sm:$0xff]
        %v309 = vld [vmem:[%s280 + $0x58] sm:$0x1]
        %v310 = vld [vmem:[%s280 + $0x60] sm:$0xff]
        %v311 = vld [vmem:[%s280 + $0x68] sm:$0x1]
        %v312 = vld [vmem:[%s280 + $0x70] sm:$0xff]
        %v313 = vld [vmem:[%s280 + $0x78] sm:$0x1]
        %v314 = vld [vmem:[%s1] sm:$0xff]
        %v315 = vld [vmem:[%s1 + $0x8] sm:$0xff]
        %v324 = vrot.slane %v301, 7
        %vm325 = vcmask 1041409
        %v326 = vsel %vm325, %v324, %v299
        %v327 = vrot.slane %v303, 6
        %vm328 = vcmask 1042434
        %v329 = vsel %vm328, %v327, %v326
        %v330 = vrot.slane %v305, 5
        %vm331 = vcmask 1043459
        %v332 = vsel %vm331, %v330, %v329
        %v333 = vrot.slane %v307, 4
        %vm334 = vcmask 1044484
        %v335 = vsel %vm334, %v333, %v332
        %v336 = vrot.slane %v309, 3
        %vm337 = vcmask 1045509
        %v338 = vsel %vm337, %v336, %v335
        %v339 = vrot.slane %v311, 2
        %vm340 = vcmask 1046534
        %v341 = vsel %vm340, %v339, %v338
        %v342 = vrot.slane %v313, 1
        %vm343 = vcmask 1047559
        %v344 = vsel %vm343, %v342, %v341
        %vm345 = vcmask 130048
        %v346 = vsel %vm345, %v344, 0
        %348 = vmatpush.msra.mxu0 0.0
        %349 = vmatpush.msra.mxu0 0.0
        %350 = vmatpush.msra.mxu0 0.0
        %351 = vmatpush.msra.mxu0 0.0
        %352 = vmatpush.msra.mxu0 0.0
        %353 = vmatpush.msra.mxu0 0.0
        %354 = vmatpush.msra.mxu0 0.0
        %355 = vmatpush.msra.mxu0 0.0
        %356 = vmatpush.msra.mxu0 0.0
        %357 = vmatpush.msra.mxu0 0.0
        %358 = vmatpush.msra.mxu0 0.0
        %359 = vmatpush.msra.mxu0 0.0
        %360 = vmatpush.msra.mxu0 0.0
        %361 = vmatpush.msra.mxu0 0.0
        %362 = vmatpush.msra.mxu0 %v315
        %363 = vmatpush.msra.mxu0 %v314
        %364 = vmatmul.f32.gmra.mxu0 %v346
        %v365 = vpop.f32.mrf.mxu0
        %v366 = vadd.f32 0.0, %v365
        %367 = vdwg.mxu0
        %v368 = vld [vmem:[%s2] sm:$0xff]
        %v369 = vld [vmem:[%s2 + $0x8] sm:$0xff]
        %v371 = vsel %vm345, %v298, 0
        %v374 = vsel %vm345, %v300, 0
        %v377 = vsel %vm345, %v302, 0
        %v380 = vsel %vm345, %v304, 0
        %v383 = vsel %vm345, %v306, 0
        %v386 = vsel %vm345, %v308, 0
        %v389 = vsel %vm345, %v310, 0
        %v392 = vsel %vm345, %v312, 0
        %394 = vmatpush.msra.mxu0 0.0
        %395 = vmatpush.msra.mxu0 0.0
        %396 = vmatpush.msra.mxu0 0.0
        %397 = vmatpush.msra.mxu0 0.0
        %398 = vmatpush.msra.mxu0 0.0
        %399 = vmatpush.msra.mxu0 0.0
        %400 = vmatpush.msra.mxu0 0.0
        %401 = vmatpush.msra.mxu0 0.0
        %402 = vmatpush.msra.mxu0 0.0
        %403 = vmatpush.msra.mxu0 0.0
        %404 = vmatpush.msra.mxu0 0.0
        %405 = vmatpush.msra.mxu0 0.0
        %406 = vmatpush.msra.mxu0 0.0
        %407 = vmatpush.msra.mxu0 0.0
        %408 = vmatpush.msra.mxu0 %v369
        %409 = vmatpush.msra.mxu0 %v368
        %410 = vmatmul.f32.gmra.mxu0 %v371
        %v411 = vpop.f32.mrf.mxu0
        %v412 = vadd.f32 0.0, %v411
        %413 = vmatmul.f32.gmra.mxu0 %v374
        %v414 = vpop.f32.mrf.mxu0
        %v415 = vadd.f32 0.0, %v414
        %416 = vmatmul.f32.gmra.mxu0 %v377
        %v417 = vpop.f32.mrf.mxu0
        %v418 = vadd.f32 0.0, %v417
        %419 = vmatmul.f32.gmra.mxu0 %v380
        %v420 = vpop.f32.mrf.mxu0
        %v421 = vadd.f32 0.0, %v420
        %422 = vmatmul.f32.gmra.mxu0 %v383
        %v423 = vpop.f32.mrf.mxu0
        %v424 = vadd.f32 0.0, %v423
        %425 = vmatmul.f32.gmra.mxu0 %v386
        %v426 = vpop.f32.mrf.mxu0
        %v427 = vadd.f32 0.0, %v426
        %428 = vmatmul.f32.gmra.mxu0 %v389
        %v429 = vpop.f32.mrf.mxu0
        %v430 = vadd.f32 0.0, %v429
        %431 = vmatmul.f32.gmra.mxu0 %v392
        %v432 = vpop.f32.mrf.mxu0
        %v433 = vadd.f32 0.0, %v432
        %434 = vdwg.mxu0
        %v436 = vrot.slane %v366, 1
        %v437 = vrot.slane %v366, 2
        %v438 = vrot.slane %v366, 3
        %v439 = vrot.slane %v366, 4
        %v440 = vrot.slane %v366, 5
        %v441 = vrot.slane %v366, 6
        %v442 = vrot.slane %v366, 7
        %v443 = vperm.slane %v366, 0
        %v444 = vperm.slane %v436, 0
        %v445 = vperm.slane %v437, 0
        %v446 = vperm.slane %v438, 0
        %v447 = vperm.slane %v439, 0
        %v448 = vperm.slane %v440, 0
        %v449 = vperm.slane %v441, 0
        %v450 = vperm.slane %v442, 0
        %v459 = vmul.f32 %v412, %v443
        %v460 = vmul.f32 %v415, %v444
        %v461 = vmul.f32 %v418, %v445
        %v462 = vmul.f32 %v421, %v446
        %v463 = vmul.f32 %v424, %v447
        %v464 = vmul.f32 %v427, %v448
        %v465 = vmul.f32 %v430, %v449
        %v466 = vmul.f32 %v433, %v450
        %v467 = vld [vmem:[%s3] sm:$0xff]
        %v468 = vld [vmem:[%s3 + $0x8] sm:$0xff]
        %v470 = vsel %vm345, %v459, 0
        %v473 = vsel %vm345, %v460, 0
        %v476 = vsel %vm345, %v461, 0
        %v479 = vsel %vm345, %v462, 0
        %v482 = vsel %vm345, %v463, 0
        %v485 = vsel %vm345, %v464, 0
        %v488 = vsel %vm345, %v465, 0
        %v491 = vsel %vm345, %v466, 0
        %493 = vmatpush.msra.mxu0 0.0
        %494 = vmatpush.msra.mxu0 0.0
        %495 = vmatpush.msra.mxu0 0.0
        %496 = vmatpush.msra.mxu0 0.0
        %497 = vmatpush.msra.mxu0 0.0
        %498 = vmatpush.msra.mxu0 0.0
        %499 = vmatpush.msra.mxu0 0.0
        %500 = vmatpush.msra.mxu0 0.0
        %501 = vmatpush.msra.mxu0 0.0
        %502 = vmatpush.msra.mxu0 0.0
        %503 = vmatpush.msra.mxu0 0.0
        %504 = vmatpush.msra.mxu0 0.0
        %505 = vmatpush.msra.mxu0 0.0
        %506 = vmatpush.msra.mxu0 0.0
        %507 = vmatpush.msra.mxu0 %v468
        %508 = vmatpush.msra.mxu0 %v467
        %509 = vmatmul.f32.gmra.mxu0 %v470
        %v510 = vpop.f32.mrf.mxu0
        %v511 = vadd.f32 0.0, %v510
        %512 = vmatmul.f32.gmra.mxu0 %v473
        %v513 = vpop.f32.mrf.mxu0
        %v514 = vadd.f32 0.0, %v513
        %515 = vmatmul.f32.gmra.mxu0 %v476
        %v516 = vpop.f32.mrf.mxu0
        %v517 = vadd.f32 0.0, %v516
        %518 = vmatmul.f32.gmra.mxu0 %v479
        %v519 = vpop.f32.mrf.mxu0
        %v520 = vadd.f32 0.0, %v519
        %521 = vmatmul.f32.gmra.mxu0 %v482
        %v522 = vpop.f32.mrf.mxu0
        %v523 = vadd.f32 0.0, %v522
        %524 = vmatmul.f32.gmra.mxu0 %v485
        %v525 = vpop.f32.mrf.mxu0
        %v526 = vadd.f32 0.0, %v525
        %527 = vmatmul.f32.gmra.mxu0 %v488
        %v528 = vpop.f32.mrf.mxu0
        %v529 = vadd.f32 0.0, %v528
        %530 = vmatmul.f32.gmra.mxu0 %v491
        %v531 = vpop.f32.mrf.mxu0
        %v532 = vadd.f32 0.0, %v531
        %533 = vdwg.mxu0
        %vm534 = vcmask 31744
        %v535 = vsel %vm534, %v511, -inf
        %v536 = vrot.slane %v535, 4
        %v537 = vmax.f32 %v535, %v536
        %v538 = vrot.slane %v537, 2
        %v539 = vmax.f32 %v537, %v538
        %v540 = vrot.slane %v539, 1
        %v541 = vmax.f32 %v539, %v540
        %v542 = vsel %vm534, %v514, -inf
        %v543 = vrot.slane %v542, 4
        %v544 = vmax.f32 %v542, %v543
        %v545 = vrot.slane %v544, 2
        %v546 = vmax.f32 %v544, %v545
        %v547 = vrot.slane %v546, 1
        %v548 = vmax.f32 %v546, %v547
        %v549 = vsel %vm534, %v517, -inf
        %v550 = vrot.slane %v549, 4
        %v551 = vmax.f32 %v549, %v550
        %v552 = vrot.slane %v551, 2
        %v553 = vmax.f32 %v551, %v552
        %v554 = vrot.slane %v553, 1
        %v555 = vmax.f32 %v553, %v554
        %v556 = vsel %vm534, %v520, -inf
        %v557 = vrot.slane %v556, 4
        %v558 = vmax.f32 %v556, %v557
        %v559 = vrot.slane %v558, 2
        %v560 = vmax.f32 %v558, %v559
        %v561 = vrot.slane %v560, 1
        %v562 = vmax.f32 %v560, %v561
        %v563 = vsel %vm534, %v523, -inf
        %v564 = vrot.slane %v563, 4
        %v565 = vmax.f32 %v563, %v564
        %v566 = vrot.slane %v565, 2
        %v567 = vmax.f32 %v565, %v566
        %v568 = vrot.slane %v567, 1
        %v569 = vmax.f32 %v567, %v568
        %v570 = vsel %vm534, %v526, -inf
        %v571 = vrot.slane %v570, 4
        %v572 = vmax.f32 %v570, %v571
        %v573 = vrot.slane %v572, 2
        %v574 = vmax.f32 %v572, %v573
        %v575 = vrot.slane %v574, 1
        %v576 = vmax.f32 %v574, %v575
        %v577 = vsel %vm534, %v529, -inf
        %v578 = vrot.slane %v577, 4
        %v579 = vmax.f32 %v577, %v578
        %v580 = vrot.slane %v579, 2
        %v581 = vmax.f32 %v579, %v580
        %v582 = vrot.slane %v581, 1
        %v583 = vmax.f32 %v581, %v582
        %v584 = vsel %vm534, %v532, -inf
        %v585 = vrot.slane %v584, 4
        %v586 = vmax.f32 %v584, %v585
        %v587 = vrot.slane %v586, 2
        %v588 = vmax.f32 %v586, %v587
        %v589 = vrot.slane %v588, 1
        %v590 = vmax.f32 %v588, %v589
        %v591 = vsub.f32 %v511, %v541
        %v592 = vsub.f32 %v514, %v548
        %v593 = vsub.f32 %v517, %v555
        %v594 = vsub.f32 %v520, %v562
        %v595 = vsub.f32 %v523, %v569
        %v596 = vsub.f32 %v526, %v576
        %v597 = vsub.f32 %v529, %v583
        %v598 = vsub.f32 %v532, %v590
        %v599 = vmul.f32 %v591, 1.442695
        %v600 = vpow.pop %v599
        %v601 = vmul.f32 %v592, 1.442695
        %v602 = vpow.pop %v601
        %v603 = vmul.f32 %v593, 1.442695
        %v604 = vpow.pop %v603
        %v605 = vmul.f32 %v594, 1.442695
        %v606 = vpow.pop %v605
        %v607 = vmul.f32 %v595, 1.442695
        %v608 = vpow.pop %v607
        %v609 = vmul.f32 %v596, 1.442695
        %v610 = vpow.pop %v609
        %v611 = vmul.f32 %v597, 1.442695
        %v612 = vpow.pop %v611
        %v613 = vmul.f32 %v598, 1.442695
        %v614 = vpow.pop %v613
        %v615 = vsel %vm534, %v600, 0.0
        %v616 = vrot.slane %v615, 4
        %v617 = vadd.f32 %v615, %v616
        %v618 = vrot.slane %v617, 2
        %v619 = vadd.f32 %v617, %v618
        %v620 = vrot.slane %v619, 1
        %v621 = vadd.f32 %v619, %v620
        %v622 = vsel %vm534, %v602, 0.0
        %v623 = vrot.slane %v622, 4
        %v624 = vadd.f32 %v622, %v623
        %v625 = vrot.slane %v624, 2
        %v626 = vadd.f32 %v624, %v625
        %v627 = vrot.slane %v626, 1
        %v628 = vadd.f32 %v626, %v627
        %v629 = vsel %vm534, %v604, 0.0
        %v630 = vrot.slane %v629, 4
        %v631 = vadd.f32 %v629, %v630
        %v632 = vrot.slane %v631, 2
        %v633 = vadd.f32 %v631, %v632
        %v634 = vrot.slane %v633, 1
        %v635 = vadd.f32 %v633, %v634
        %v636 = vsel %vm534, %v606, 0.0
        %v637 = vrot.slane %v636, 4
        %v638 = vadd.f32 %v636, %v637
        %v639 = vrot.slane %v638, 2
        %v640 = vadd.f32 %v638, %v639
        %v641 = vrot.slane %v640, 1
        %v642 = vadd.f32 %v640, %v641
        %v643 = vsel %vm534, %v608, 0.0
        %v644 = vrot.slane %v643, 4
        %v645 = vadd.f32 %v643, %v644
        %v646 = vrot.slane %v645, 2
        %v647 = vadd.f32 %v645, %v646
        %v648 = vrot.slane %v647, 1
        %v649 = vadd.f32 %v647, %v648
        %v650 = vsel %vm534, %v610, 0.0
        %v651 = vrot.slane %v650, 4
        %v652 = vadd.f32 %v650, %v651
        %v653 = vrot.slane %v652, 2
        %v654 = vadd.f32 %v652, %v653
        %v655 = vrot.slane %v654, 1
        %v656 = vadd.f32 %v654, %v655
        %v657 = vsel %vm534, %v612, 0.0
        %v658 = vrot.slane %v657, 4
        %v659 = vadd.f32 %v657, %v658
        %v660 = vrot.slane %v659, 2
        %v661 = vadd.f32 %v659, %v660
        %v662 = vrot.slane %v661, 1
        %v663 = vadd.f32 %v661, %v662
        %v664 = vsel %vm534, %v614, 0.0
        %v665 = vrot.slane %v664, 4
        %v666 = vadd.f32 %v664, %v665
        %v667 = vrot.slane %v666, 2
        %v668 = vadd.f32 %v666, %v667
        %v669 = vrot.slane %v668, 1
        %v670 = vadd.f32 %v668, %v669
        %v671 = vrcp.pop %v621
        %v672 = vmul.f32 %v621, %v671
        %v673 = vsub.f32 1.0, %v672
        %v674 = vmul.f32 %v671, %v673
        %v675 = vadd.f32 %v671, %v674
        %vm676 = vweird.f32 %v621
        %vm677 = vweird.f32 %v671
        %vm678 = vmor %vm676, %vm677
        %v679 = vsel %vm678, %v671, %v675
        %v680 = vand.u32 2147483647, %v621
        %vm681 = vcmp.eq.f32.partialorder %v680, 8.507059e+37
        %v682 = vand.u32 %v621, 2147483648
        %v683 = vor.u32 1.1754944e-38, %v682
        %v684 = vsel %vm681, %v683, %v679
        %v685 = vmul.f32 1.0, %v684
        %v686 = vrcp.pop %v628
        %v687 = vmul.f32 %v628, %v686
        %v688 = vsub.f32 1.0, %v687
        %v689 = vmul.f32 %v686, %v688
        %v690 = vadd.f32 %v686, %v689
        %vm691 = vweird.f32 %v628
        %vm692 = vweird.f32 %v686
        %vm693 = vmor %vm691, %vm692
        %v694 = vsel %vm693, %v686, %v690
        %v695 = vand.u32 2147483647, %v628
        %vm696 = vcmp.eq.f32.partialorder %v695, 8.507059e+37
        %v697 = vand.u32 %v628, 2147483648
        %v698 = vor.u32 1.1754944e-38, %v697
        %v699 = vsel %vm696, %v698, %v694
        %v700 = vmul.f32 1.0, %v699
        %v701 = vrcp.pop %v635
        %v702 = vmul.f32 %v635, %v701
        %v703 = vsub.f32 1.0, %v702
        %v704 = vmul.f32 %v701, %v703
        %v705 = vadd.f32 %v701, %v704
        %vm706 = vweird.f32 %v635
        %vm707 = vweird.f32 %v701
        %vm708 = vmor %vm706, %vm707
        %v709 = vsel %vm708, %v701, %v705
        %v710 = vand.u32 2147483647, %v635
        %vm711 = vcmp.eq.f32.partialorder %v710, 8.507059e+37
        %v712 = vand.u32 %v635, 2147483648
        %v713 = vor.u32 1.1754944e-38, %v712
        %v714 = vsel %vm711, %v713, %v709
        %v715 = vmul.f32 1.0, %v714
        %v716 = vrcp.pop %v642
        %v717 = vmul.f32 %v642, %v716
        %v718 = vsub.f32 1.0, %v717
        %v719 = vmul.f32 %v716, %v718
        %v720 = vadd.f32 %v716, %v719
        %vm721 = vweird.f32 %v642
        %vm722 = vweird.f32 %v716
        %vm723 = vmor %vm721, %vm722
        %v724 = vsel %vm723, %v716, %v720
        %v725 = vand.u32 2147483647, %v642
        %vm726 = vcmp.eq.f32.partialorder %v725, 8.507059e+37
        %v727 = vand.u32 %v642, 2147483648
        %v728 = vor.u32 1.1754944e-38, %v727
        %v729 = vsel %vm726, %v728, %v724
        %v730 = vmul.f32 1.0, %v729
        %v731 = vrcp.pop %v649
        %v732 = vmul.f32 %v649, %v731
        %v733 = vsub.f32 1.0, %v732
        %v734 = vmul.f32 %v731, %v733
        %v735 = vadd.f32 %v731, %v734
        %vm736 = vweird.f32 %v649
        %vm737 = vweird.f32 %v731
        %vm738 = vmor %vm736, %vm737
        %v739 = vsel %vm738, %v731, %v735
        %v740 = vand.u32 2147483647, %v649
        %vm741 = vcmp.eq.f32.partialorder %v740, 8.507059e+37
        %v742 = vand.u32 %v649, 2147483648
        %v743 = vor.u32 1.1754944e-38, %v742
        %v744 = vsel %vm741, %v743, %v739
        %v745 = vmul.f32 1.0, %v744
        %v746 = vrcp.pop %v656
        %v747 = vmul.f32 %v656, %v746
        %v748 = vsub.f32 1.0, %v747
        %v749 = vmul.f32 %v746, %v748
        %v750 = vadd.f32 %v746, %v749
        %vm751 = vweird.f32 %v656
        %vm752 = vweird.f32 %v746
        %vm753 = vmor %vm751, %vm752
        %v754 = vsel %vm753, %v746, %v750
        %v755 = vand.u32 2147483647, %v656
        %vm756 = vcmp.eq.f32.partialorder %v755, 8.507059e+37
        %v757 = vand.u32 %v656, 2147483648
        %v758 = vor.u32 1.1754944e-38, %v757
        %v759 = vsel %vm756, %v758, %v754
        %v760 = vmul.f32 1.0, %v759
        %v761 = vrcp.pop %v663
        %v762 = vmul.f32 %v663, %v761
        %v763 = vsub.f32 1.0, %v762
        %v764 = vmul.f32 %v761, %v763
        %v765 = vadd.f32 %v761, %v764
        %vm766 = vweird.f32 %v663
        %vm767 = vweird.f32 %v761
        %vm768 = vmor %vm766, %vm767
        %v769 = vsel %vm768, %v761, %v765
        %v770 = vand.u32 2147483647, %v663
        %vm771 = vcmp.eq.f32.partialorder %v770, 8.507059e+37
        %v772 = vand.u32 %v663, 2147483648
        %v773 = vor.u32 1.1754944e-38, %v772
        %v774 = vsel %vm771, %v773, %v769
        %v775 = vmul.f32 1.0, %v774
        %v776 = vrcp.pop %v670
        %v777 = vmul.f32 %v670, %v776
        %v778 = vsub.f32 1.0, %v777
        %v779 = vmul.f32 %v776, %v778
        %v780 = vadd.f32 %v776, %v779
        %vm781 = vweird.f32 %v670
        %vm782 = vweird.f32 %v776
        %vm783 = vmor %vm781, %vm782
        %v784 = vsel %vm783, %v776, %v780
        %v785 = vand.u32 2147483647, %v670
        %vm786 = vcmp.eq.f32.partialorder %v785, 8.507059e+37
        %v787 = vand.u32 %v670, 2147483648
        %v788 = vor.u32 1.1754944e-38, %v787
        %v789 = vsel %vm786, %v788, %v784
        %v790 = vmul.f32 1.0, %v789
        %v791 = vmul.f32 %v600, %v685
        %v792 = vmul.f32 %v602, %v700
        %v793 = vmul.f32 %v604, %v715
        %v794 = vmul.f32 %v606, %v730
        %v795 = vmul.f32 %v608, %v745
        %v796 = vmul.f32 %v610, %v760
        %v797 = vmul.f32 %v612, %v775
        %v798 = vmul.f32 %v614, %v790
        %v799 = vld [vmem:[%s4] sm:$0xf]
        %v801 = vsel %vm534, %v791, 0
        %v804 = vsel %vm534, %v792, 0
        %v807 = vsel %vm534, %v793, 0
        %v810 = vsel %vm534, %v794, 0
        %v813 = vsel %vm534, %v795, 0
        %v816 = vsel %vm534, %v796, 0
        %v819 = vsel %vm534, %v797, 0
        %v822 = vsel %vm534, %v798, 0
        %vm824 = vcmask 1043456
        %v826 = vsel %vm824, %v799, 0
        %828 = vmatpush.msra.mxu0 0.0
        %829 = vmatpush.msra.mxu0 0.0
        %830 = vmatpush.msra.mxu0 0.0
        %831 = vmatpush.msra.mxu0 0.0
        %832 = vmatpush.msra.mxu0 0.0
        %833 = vmatpush.msra.mxu0 0.0
        %834 = vmatpush.msra.mxu0 0.0
        %835 = vmatpush.msra.mxu0 0.0
        %836 = vmatpush.msra.mxu0 0.0
        %837 = vmatpush.msra.mxu0 0.0
        %838 = vmatpush.msra.mxu0 0.0
        %839 = vmatpush.msra.mxu0 0.0
        %840 = vmatpush.msra.mxu0 0.0
        %841 = vmatpush.msra.mxu0 0.0
        %842 = vmatpush.msra.mxu0 0.0
        %843 = vmatpush.msra.mxu0 %v826
        %844 = vmatmul.f32.gmra.mxu0 %v801
        %v845 = vpop.f32.mrf.mxu0
        %v846 = vadd.f32 0.0, %v845
        %847 = vmatmul.f32.gmra.mxu0 %v804
        %v848 = vpop.f32.mrf.mxu0
        %v849 = vadd.f32 0.0, %v848
        %850 = vmatmul.f32.gmra.mxu0 %v807
        %v851 = vpop.f32.mrf.mxu0
        %v852 = vadd.f32 0.0, %v851
        %853 = vmatmul.f32.gmra.mxu0 %v810
        %v854 = vpop.f32.mrf.mxu0
        %v855 = vadd.f32 0.0, %v854
        %856 = vmatmul.f32.gmra.mxu0 %v813
        %v857 = vpop.f32.mrf.mxu0
        %v858 = vadd.f32 0.0, %v857
        %859 = vmatmul.f32.gmra.mxu0 %v816
        %v860 = vpop.f32.mrf.mxu0
        %v861 = vadd.f32 0.0, %v860
        %862 = vmatmul.f32.gmra.mxu0 %v819
        %v863 = vpop.f32.mrf.mxu0
        %v864 = vadd.f32 0.0, %v863
        %865 = vmatmul.f32.gmra.mxu0 %v822
        %v866 = vpop.f32.mrf.mxu0
        %v867 = vadd.f32 0.0, %v866
        %868 = vdwg.mxu0
        %877 = vrot.lane.b32.xlu0 %v412, 112
        %v878 = vpop.permute.xlu0 %877
        %879 = vrot.lane.b32.xlu0 %v415, 112
        %v880 = vpop.permute.xlu0 %879
        %881 = vrot.lane.b32.xlu0 %v418, 112
        %v882 = vpop.permute.xlu0 %881
        %883 = vrot.lane.b32.xlu0 %v421, 112
        %v884 = vpop.permute.xlu0 %883
        %885 = vrot.lane.b32.xlu0 %v424, 112
        %v886 = vpop.permute.xlu0 %885
        %887 = vrot.lane.b32.xlu0 %v427, 112
        %v888 = vpop.permute.xlu0 %887
        %889 = vrot.lane.b32.xlu0 %v430, 112
        %v890 = vpop.permute.xlu0 %889
        %891 = vrot.lane.b32.xlu0 %v433, 112
        %v892 = vpop.permute.xlu0 %891
        %v901 = vmul.f32 %v846, %v878
        %v902 = vmul.f32 %v849, %v880
        %v903 = vmul.f32 %v852, %v882
        %v904 = vmul.f32 %v855, %v884
        %v905 = vmul.f32 %v858, %v886
        %v906 = vmul.f32 %v861, %v888
        %v907 = vmul.f32 %v864, %v890
        %v908 = vmul.f32 %v867, %v892
        %v909 = vsel %vm345, %v901, 0.0
        %v910 = vrot.slane %v909, 4
        %v911 = vadd.f32 %v909, %v910
        %v912 = vrot.slane %v911, 2
        %v913 = vadd.f32 %v911, %v912
        %v914 = vrot.slane %v913, 1
        %v915 = vadd.f32 %v913, %v914
        %v916 = vsel %vm345, %v902, 0.0
        %v917 = vrot.slane %v916, 4
        %v918 = vadd.f32 %v916, %v917
        %v919 = vrot.slane %v918, 2
        %v920 = vadd.f32 %v918, %v919
        %v921 = vrot.slane %v920, 1
        %v922 = vadd.f32 %v920, %v921
        %v923 = vsel %vm345, %v903, 0.0
        %v924 = vrot.slane %v923, 4
        %v925 = vadd.f32 %v923, %v924
        %v926 = vrot.slane %v925, 2
        %v927 = vadd.f32 %v925, %v926
        %v928 = vrot.slane %v927, 1
        %v929 = vadd.f32 %v927, %v928
        %v930 = vsel %vm345, %v904, 0.0
        %v931 = vrot.slane %v930, 4
        %v932 = vadd.f32 %v930, %v931
        %v933 = vrot.slane %v932, 2
        %v934 = vadd.f32 %v932, %v933
        %v935 = vrot.slane %v934, 1
        %v936 = vadd.f32 %v934, %v935
        %v937 = vsel %vm345, %v905, 0.0
        %v938 = vrot.slane %v937, 4
        %v939 = vadd.f32 %v937, %v938
        %v940 = vrot.slane %v939, 2
        %v941 = vadd.f32 %v939, %v940
        %v942 = vrot.slane %v941, 1
        %v943 = vadd.f32 %v941, %v942
        %v944 = vsel %vm345, %v906, 0.0
        %v945 = vrot.slane %v944, 4
        %v946 = vadd.f32 %v944, %v945
        %v947 = vrot.slane %v946, 2
        %v948 = vadd.f32 %v946, %v947
        %v949 = vrot.slane %v948, 1
        %v950 = vadd.f32 %v948, %v949
        %v951 = vsel %vm345, %v907, 0.0
        %v952 = vrot.slane %v951, 4
        %v953 = vadd.f32 %v951, %v952
        %v954 = vrot.slane %v953, 2
        %v955 = vadd.f32 %v953, %v954
        %v956 = vrot.slane %v955, 1
        %v957 = vadd.f32 %v955, %v956
        %v958 = vsel %vm345, %v908, 0.0
        %v959 = vrot.slane %v958, 4
        %v960 = vadd.f32 %v958, %v959
        %v961 = vrot.slane %v960, 2
        %v962 = vadd.f32 %v960, %v961
        %v963 = vrot.slane %v962, 1
        %v964 = vadd.f32 %v962, %v963
        %973 = vrot.lane.b32.xlu0 %v915, 32
        %v974 = vpop.permute.xlu0 %973
        %975 = vrot.lane.b32.xlu0 %v922, 32
        %v976 = vpop.permute.xlu0 %975
        %977 = vrot.lane.b32.xlu0 %v929, 32
        %v978 = vpop.permute.xlu0 %977
        %979 = vrot.lane.b32.xlu0 %v936, 32
        %v980 = vpop.permute.xlu0 %979
        %981 = vrot.lane.b32.xlu0 %v943, 32
        %v982 = vpop.permute.xlu0 %981
        %983 = vrot.lane.b32.xlu0 %v950, 32
        %v984 = vpop.permute.xlu0 %983
        %985 = vrot.lane.b32.xlu0 %v957, 32
        %v986 = vpop.permute.xlu0 %985
        %987 = vrot.lane.b32.xlu0 %v964, 32
        %v988 = vpop.permute.xlu0 %987
        %v997 = vmul.f32 %v412, %v974
        %v998 = vmul.f32 %v415, %v976
        %v999 = vmul.f32 %v418, %v978
        %v1000 = vmul.f32 %v421, %v980
        %v1001 = vmul.f32 %v424, %v982
        %v1002 = vmul.f32 %v427, %v984
        %v1003 = vmul.f32 %v430, %v986
        %v1004 = vmul.f32 %v433, %v988
        %1013 = vrot.lane.b32.xlu0 %v997, 96
        %v1014 = vpop.permute.xlu0 %1013
        %1015 = vrot.lane.b32.xlu0 %v998, 96
        %v1016 = vpop.permute.xlu0 %1015
        %1017 = vrot.lane.b32.xlu0 %v999, 96
        %v1018 = vpop.permute.xlu0 %1017
        %1019 = vrot.lane.b32.xlu0 %v1000, 96
        %v1020 = vpop.permute.xlu0 %1019
        %1021 = vrot.lane.b32.xlu0 %v1001, 96
        %v1022 = vpop.permute.xlu0 %1021
        %1023 = vrot.lane.b32.xlu0 %v1002, 96
        %v1024 = vpop.permute.xlu0 %1023
        %1025 = vrot.lane.b32.xlu0 %v1003, 96
        %v1026 = vpop.permute.xlu0 %1025
        %1027 = vrot.lane.b32.xlu0 %v1004, 96
        %v1028 = vpop.permute.xlu0 %1027
        %v1037 = vsel %vm345, %v1014, 0.0
        %1038 = vadd.xlane.f32.xlu0 %v1037
        %v1039 = vpop.xlane.xlu0 %1038
        %v1040 = vsel %vm345, %v1016, 0.0
        %1041 = vadd.xlane.f32.xlu0 %v1040
        %v1042 = vpop.xlane.xlu0 %1041
        %v1043 = vsel %vm345, %v1018, 0.0
        %1044 = vadd.xlane.f32.xlu0 %v1043
        %v1045 = vpop.xlane.xlu0 %1044
        %v1046 = vsel %vm345, %v1020, 0.0
        %1047 = vadd.xlane.f32.xlu0 %v1046
        %v1048 = vpop.xlane.xlu0 %1047
        %v1049 = vsel %vm345, %v1022, 0.0
        %1050 = vadd.xlane.f32.xlu0 %v1049
        %v1051 = vpop.xlane.xlu0 %1050
        %v1052 = vsel %vm345, %v1024, 0.0
        %1053 = vadd.xlane.f32.xlu0 %v1052
        %v1054 = vpop.xlane.xlu0 %1053
        %v1055 = vsel %vm345, %v1026, 0.0
        %1056 = vadd.xlane.f32.xlu0 %v1055
        %v1057 = vpop.xlane.xlu0 %1056
        %v1058 = vsel %vm345, %v1028, 0.0
        %1059 = vadd.xlane.f32.xlu0 %v1058
        %v1060 = vpop.xlane.xlu0 %1059
        %v1069 = vlaneseq
        %v1070 = vand.u32 %v1069, 127
        %v1071 = vperm.slane %v1039, %v1070
        %v1072 = vperm.slane %v1042, %v1070
        %v1073 = vperm.slane %v1045, %v1070
        %v1074 = vperm.slane %v1048, %v1070
        %v1075 = vperm.slane %v1051, %v1070
        %v1076 = vperm.slane %v1054, %v1070
        %v1077 = vperm.slane %v1057, %v1070
        %v1078 = vperm.slane %v1060, %v1070
        %v1079 = vsel %vm325, %v1072, %v1071
        %v1080 = vsel %vm328, %v1073, %v1079
        %v1081 = vsel %vm331, %v1074, %v1080
        %v1082 = vsel %vm334, %v1075, %v1081
        %v1083 = vsel %vm337, %v1076, %v1082
        %v1084 = vsel %vm340, %v1077, %v1083
        %v1085 = vsel %vm343, %v1078, %v1084
        %vm1087 = vcmask 64512
        %1088 = vst.msk [vmem:[#allocation2] sm:$0xff] %vm1087, %v1085
      $region48: #{attention_edge_decoder.1} parent=43 // pred_fallthru
        _
      %v1089 = vld [vmem:[#allocation2] sm:$0xff]
      %v1090 = vld [vmem:[%s285] sm:$0xff]
      %vm1091 = vcmask 64512
      %v1093 = vsel %vm1091, %v1089, 0
      %1095 = vmatpush.msra.mxu0 0.0
      %1096 = vmatpush.msra.mxu0 0.0
      %1097 = vmatpush.msra.mxu0 0.0
      %1098 = vmatpush.msra.mxu0 0.0
      %1099 = vmatpush.msra.mxu0 0.0
      %1100 = vmatpush.msra.mxu0 0.0
      %1101 = vmatpush.msra.mxu0 0.0
      %1102 = vmatpush.msra.mxu0 0.0
      %1103 = vmatpush.msra.mxu0 0.0
      %1104 = vmatpush.msra.mxu0 0.0
      %1105 = vmatpush.msra.mxu0 0.0
      %1106 = vmatpush.msra.mxu0 0.0
      %1107 = vmatpush.msra.mxu0 0.0
      %1108 = vmatpush.msra.mxu0 0.0
      %1109 = vmatpush.msra.mxu0 0.0
      %1110 = vmatpush.msra.mxu0 %v1090
      %1111 = vmatmul.f32.gmra.mxu0 %v1093
      %v1112 = vpop.f32.mrf.mxu0
      %v1113 = vadd.f32 0.0, %v1112
      %1114 = vdwg.mxu0
      %1115 = vst [vmem:[%s293] sm:$0xff] %v1113
      %p1116 = scmp.lt.s32.totalorder %s21, 1
      %s1117 = scalar_select %p1116, %s21, 1
      %p1118 = scmp.lt.s32.totalorder %s22, 1
      %s1119 = scalar_select %p1118, %s22, 1
      %s1120 = smul.addr %s1117, 2
      %s1121 = sadd.s32 %s1119, %s1120
      %s1122 = smul.addr %s1121, 8
      %s1123 = scalar_lea.vmem %s6, %s1122
      // Predicated region
      $region49: #{attention_edge_decoder.1} parent=43 // pred_check
        %p1124 = pneg %p185
      $region50: #{attention_edge_decoder.1} parent=43 // pred_check_branch
        %1126 = sbr.rel (%p1124) target = $region52
      $region51: #{attention_edge_decoder.1} parent=43 // pred_region
        _
      $region52: #{attention_edge_decoder.1} parent=43 // pred_fallthru
        _
    $region44: #{attention_edge_decoder.1} parent=5 // pred_fallthru
      _
    %p1127 = scmp.le.s32.totalorder 2, %s12
    // Predicated region
    $region53: #{attention_edge_decoder.1} parent=5 // pred_check
      %p1128 = pneg %p1127
    $region54: #{attention_edge_decoder.1} parent=5 // pred_check_branch
      %1130 = sbr.rel (%p1128) target = $region56
    $region55: #{attention_edge_decoder.1} parent=5 // pred_region
      %s1131 = ssub.s32 %s12, 2
      // Predicated region
      $region57: #{attention_edge_decoder.1} parent=55 // pred_check
        %p1132 = pneg %p191
      $region58: #{attention_edge_decoder.1} parent=55 // pred_check_branch
        %1134 = sbr.rel (%p1132) target = $region60
      $region59: #{attention_edge_decoder.1} parent=55 // pred_region
        %p1135 = scmp.lt.s32.totalorder %s23, 1
        %s1136 = scalar_select %p1135, %s23, 1
        %p1137 = scmp.lt.s32.totalorder %s24, 1
        %s1138 = scalar_select %p1137, %s24, 1
        %s1139 = smul.addr %s1136, 2
        %s1140 = sadd.s32 %s1138, %s1139
        %s1141 = smul.addr %s1140, 8
        %s1142 = scalar_lea.vmem %s6, %s1141
      $region60: #{attention_edge_decoder.1} parent=55 // pred_fallthru
        _
    $region56: #{attention_edge_decoder.1} parent=5 // pred_fallthru
      _
  $region6: #{attention_edge_decoder.1} parent=0 // loop_footer
    %s16 = sadd.s32 1, %s12
  $region7: #{attention_edge_decoder.1} parent=0 // loop_footer_branch
    %11 = sbr.rel target = $region3
  $region8: #{attention_edge_decoder.1} parent=0 // loop_exit
    _

</llo_original>
